<compile_context>
chip_gen: v6e
topology: v6e:2x2x1
jax: 0.10.0
libtpu: 0.0.40
codegen_flags: <defaults>
</compile_context>

<pallas_src>
import functools

import jax
import jax.numpy as jnp
from jax.experimental import pallas as pl
from jax.experimental.pallas import tpu as pltpu


def _round_up(x, m):
    return ((x + m - 1) // m) * m


_NEG_INF = -1e30  # finite sentinel: safe in f32, avoids inf - inf -> NaN


def _sdpa_kernel(*refs, scale, pv_dtype, has_bias, single_pass, approx_recip):
    """softmax(q @ k * scale) @ v ; flash-style when the kv axis is tiled."""
    # Unpack refs according to compile-time configuration:
    #   inputs: q, k, v, [bias]; outputs: o; scratch (online path): m, l, acc.
    if has_bias:
        q_ref, k_ref, v_ref, bias_ref = refs[:4]
        rest = refs[4:]
    else:
        q_ref, k_ref, v_ref = refs[:3]
        bias_ref = None
        rest = refs[3:]
    if single_pass:
        (o_ref,) = rest
    else:
        o_ref, m_sc, l_sc, acc_sc = rest

    # ---- scores: s = (q * scale) @ k  (+ padding bias), f32 accumulation ----
    q = q_ref[...]
    if scale != 1.0:
        # Fold scale into the small (tm, K) q tile; python float keeps native dtype.
        q = q * scale
    s = jnp.dot(q, k_ref[...], preferred_element_type=jnp.float32)
    if bias_ref is not None:
        s = s + bias_ref[...]  # (1, tn) additive mask row, broadcast over sublanes

    def pv_matmul(p):
        # bf16 MXU pass for the PV matmul; accumulate in f32.
        return jnp.dot(p.astype(pv_dtype), v_ref[...].astype(pv_dtype),
                       preferred_element_type=jnp.float32)

    # Dropout2d(p=0.0) is the identity -> nothing to apply.

    if single_pass:
        # Whole key/value stream resident: plain single-pass softmax.
        m = jnp.max(s, axis=-1, keepdims=True)
        p = jnp.exp(s - m)
        l = jnp.sum(p, axis=-1, keepdims=True)
        inv_l = pl.reciprocal(l, approx=approx_recip)     # EUP slot
        o_ref[...] = (pv_matmul(p) * inv_l).astype(o_ref.dtype)
        return

    # ---- online (flash) softmax over the kv grid axis ------------------------
    j = pl.program_id(1)

    @pl.when(j == 0)
    def _init():
        m_sc[...] = jnp.full_like(m_sc, _NEG_INF)
        l_sc[...] = jnp.zeros_like(l_sc)
        acc_sc[...] = jnp.zeros_like(acc_sc)

    m_prev = m_sc[...]
    m_new = jnp.maximum(m_prev, jnp.max(s, axis=-1, keepdims=True))
    alpha = jnp.exp(m_prev - m_new)
    p = jnp.exp(s - m_new)

    l_sc[...] = alpha * l_sc[...] + jnp.sum(p, axis=-1, keepdims=True)
    acc_sc[...] = alpha * acc_sc[...] + pv_matmul(p)
    m_sc[...] = m_new

    @pl.when(j == pl.num_programs(1) - 1)
    def _finalize():
        inv_l = pl.reciprocal(l_sc[...], approx=approx_recip)
        o_ref[...] = (acc_sc[...] * inv_l).astype(o_ref.dtype)


def sdpa_pallas(q, k, v, scale_factor, *, block_m=256, block_n=512,
                vmem_tile_budget=28 * 2**20, approx_recip=True):
    """softmax(q @ k * scale_factor, axis=-1) @ v via a tiled Pallas TPU kernel."""
    M, K = q.shape
    K2, N = k.shape
    N2, D = v.shape
    assert K == K2 and N == N2, "incompatible shapes"
    out_dtype = q.dtype
    in_itemsize = jnp.dtype(q.dtype).itemsize
    out_itemsize = jnp.dtype(out_dtype).itemsize

    # Sublane minimum depends on element width (f32:8, bf16:16, int8/fp8:32).
    sub = {4: 8, 2: 16, 1: 32}[in_itemsize]

    # Lane-dense padding of the contraction/output last dims.
    K_pad = _round_up(K, 128)
    D_pad = _round_up(D, 128)

    tm = min(_round_up(block_m, sub), _round_up(M, sub))
    M_pad = _round_up(M, tm)
    num_m_blocks = M_pad // tm

    N_pad128 = _round_up(N, 128)

    def working_set(tn):
        ws = 2 * (tm * K_pad + K_pad * tn + tn * D_pad) * in_itemsize  # dbl-buf q/k/v
        ws += 2 * tm * D_pad * out_itemsize                            # dbl-buf out
        ws += (tm * D_pad + 2 * tm) * 4                                # acc/m/l scratch
        ws += 4 * tm * tn * 4                                          # s/p f32 temps
        return ws

    if working_set(N_pad128) <= vmem_tile_budget:
        # Collapse the reduction axis: K/V DMA'd once per M block, single-pass softmax.
        tn = N_pad128
    else:
        tn = min(_round_up(block_n, 128), N_pad128)
    N_pad = _round_up(N, tn)
    num_kv_blocks = N_pad // tn
    single_pass = num_kv_blocks == 1
    needs_mask = N_pad != N

    def pad2(x, rows, cols):
        if x.shape == (rows, cols):
            return x  # skip the extra HBM pad copy when already aligned
        return jnp.pad(x, ((0, rows - x.shape[0]), (0, cols - x.shape[1])))

    qp = pad2(q, M_pad, K_pad)
    kp = pad2(k, K_pad, N_pad)
    vp = pad2(v, N_pad, D_pad)

    # PV matmul dtype: bf16 when v is f32 (p in [0,1]; ~4x MXU throughput), else native.
    pv_dtype = jnp.bfloat16 if jnp.dtype(v.dtype) == jnp.float32 else v.dtype

    kernel = functools.partial(
        _sdpa_kernel, scale=float(scale_factor), pv_dtype=pv_dtype,
        has_bias=needs_mask, single_pass=single_pass, approx_recip=approx_recip)

    operands = [qp, kp, vp]
    if single_pass:
        grid = (num_m_blocks,)
        in_specs = [
            pl.BlockSpec((tm, K_pad), lambda i: (i, 0)),   # q tile
            pl.BlockSpec((K_pad, tn), lambda i: (0, 0)),   # full K
            pl.BlockSpec((tn, D_pad), lambda i: (0, 0)),   # full V
        ]
        if needs_mask:
            in_specs.append(pl.BlockSpec((1, tn), lambda i: (0, 0)))
        out_specs = pl.BlockSpec((tm, D_pad), lambda i: (i, 0))
        scratch_shapes = []
        dim_sem = ("parallel",)
    else:
        grid = (num_m_blocks, num_kv_blocks)               # reduction axis last
        in_specs = [
            pl.BlockSpec((tm, K_pad), lambda i, j: (i, 0)),
            pl.BlockSpec((K_pad, tn), lambda i, j: (0, j)),
            pl.BlockSpec((tn, D_pad), lambda i, j: (j, 0)),
        ]
        if needs_mask:
            in_specs.append(pl.BlockSpec((1, tn), lambda i, j: (0, j)))
        out_specs = pl.BlockSpec((tm, D_pad), lambda i, j: (i, 0))  # resident over j
        scratch_shapes = [
            pltpu.VMEM((tm, 1), jnp.float32),       # running max m
            pltpu.VMEM((tm, 1), jnp.float32),       # running denom l
            pltpu.VMEM((tm, D_pad), jnp.float32),   # output accumulator
        ]
        dim_sem = ("parallel", "arbitrary")

    if needs_mask:
        bias = jnp.where(jnp.arange(N_pad) < N, 0.0, _NEG_INF).astype(jnp.float32)
        operands.append(bias.reshape(1, N_pad))

    cost = pl.CostEstimate(
        flops=2 * M_pad * N_pad * (K_pad + D_pad),
        transcendentals=M_pad * N_pad,
        bytes_accessed=(in_itemsize * (M_pad * K_pad
                                       + num_m_blocks * (K_pad * N_pad + N_pad * D_pad))
                        + out_itemsize * M_pad * D_pad),
    )

    vmem_limit = int(min(100 * 2**20, max(32 * 2**20, 2 * working_set(tn))))

    out_padded = pl.pallas_call(
        kernel,
        out_shape=jax.ShapeDtypeStruct((M_pad, D_pad), out_dtype),
        grid=grid,
        in_specs=in_specs,
        out_specs=out_specs,
        scratch_shapes=scratch_shapes,
        compiler_params=pltpu.CompilerParams(
            dimension_semantics=dim_sem,
            vmem_limit_bytes=vmem_limit,
        ),
        cost_estimate=cost,
    )(*operands)

    if (M_pad, D_pad) == (M, D):
        return out_padded
    return out_padded[:M, :D]


def sdpa_ref(q, k, v, scale_factor):
    qk = jnp.matmul(q, k) * scale_factor
    p = jax.nn.softmax(qk, axis=-1)
    return jnp.matmul(p, v)


if __name__ == "__main__":
    key = jax.random.PRNGKey(0)
    keys = jax.random.split(key, 6)

    # Test 1: module-scale shapes (seq=10, dim=5), scale_factor=1 (single-pass path).
    M, K, N, D = 10, 5, 10, 5
    q = jax.random.normal(keys[0], (M, K), dtype=jnp.float32)
    kk = jax.random.normal(keys[1], (K, N), dtype=jnp.float32)
    v = jax.random.normal(keys[2], (N, D), dtype=jnp.float32)
    out = sdpa_pallas(q, kk, v, 1)
    jax.block_until_ready(out)
    ref = sdpa_ref(q, kk, v, 1.0)
    assert out.shape == (M, D)
    assert jnp.allclose(out, ref, atol=1e-2, rtol=1e-2), "mismatch vs reference (test 1)"

    # Test 2: larger shapes, full-N single pass (K/V streamed once per M block).
    M2, K2, N2, D2 = 200, 64, 320, 96
    q2 = jax.random.normal(keys[3], (M2, K2), dtype=jnp.float32)
    k2 = jax.random.normal(keys[4], (K2, N2), dtype=jnp.float32)
    v2 = jax.random.normal(keys[5], (N2, D2), dtype=jnp.float32)
    scale2 = 1.0 / (K2 ** 0.5)
    out2 = sdpa_pallas(q2, k2, v2, scale2)
    jax.block_until_ready(out2)
    ref2 = sdpa_ref(q2, k2, v2, scale2)
    assert out2.shape == (M2, D2)
    assert jnp.allclose(out2, ref2, atol=1e-2, rtol=1e-2), "mismatch vs reference (test 2)"

    # Test 3: force the multi-step online-softmax path (small tn) to exercise the
    # flash accumulators, the additive padding bias on the last kv tile, and pl.when.
    out3 = sdpa_pallas(q2, k2, v2, scale2, block_n=128, vmem_tile_budget=0)
    jax.block_until_ready(out3)
    assert jnp.allclose(out3, ref2, atol=1e-2, rtol=1e-2), "mismatch vs reference (test 3)"

    # Test 4: bf16 inputs exercise the native-dtype MXU path and bf16 sublane tiling.
    q4, k4, v4 = (x.astype(jnp.bfloat16) for x in (q2, k2, v2))
    out4 = sdpa_pallas(q4, k4, v4, scale2)
    jax.block_until_ready(out4)
    ref4 = sdpa_ref(q4.astype(jnp.float32), k4.astype(jnp.float32),
                    v4.astype(jnp.float32), scale2)
    assert jnp.allclose(out4.astype(jnp.float32), ref4, atol=7e-2, rtol=7e-2), \
        "mismatch vs reference (test 4, bf16)"

    print("KERNEL_OK")
</pallas_src>

<mosaic_0001>
module attributes {stable_mosaic.version = 11 : i64} {
  func.func @_sdpa_kernel(%arg0: i32, %arg1: memref<16x128xf32, #tpu.memory_space<vmem>>, %arg2: memref<128x128xf32, #tpu.memory_space<vmem>>, %arg3: memref<128x128xf32, #tpu.memory_space<vmem>>, %arg4: memref<1x128xf32, #tpu.memory_space<vmem>>, %arg5: memref<16x128xf32, #tpu.memory_space<vmem>>) attributes {dimension_semantics = [#tpu.dimension_semantics<parallel>], iteration_bounds = array<i64: 1>, scalar_prefetch = 0 : i64, scratch_operands = 0 : i64, tpu.core_type = #tpu.core_type<tc>, window_params = [{transform_indices = @transform_0, window_bounds = array<i64: 16, 128>}, {pipeline_mode = #tpu.pipeline_mode<synchronous>, transform_indices = @transform_1, window_bounds = array<i64: 128, 128>}, {pipeline_mode = #tpu.pipeline_mode<synchronous>, transform_indices = @transform_2, window_bounds = array<i64: 128, 128>}, {pipeline_mode = #tpu.pipeline_mode<synchronous>, transform_indices = @transform_3, window_bounds = array<i64: 1, 128>}, {transform_indices = @transform_4, window_bounds = array<i64: 16, 128>}]} {
    %c0 = arith.constant 0 : index
    %c0_0 = arith.constant 0 : index
    %0 = vector.load %arg1[%c0, %c0_0] : memref<16x128xf32, #tpu.memory_space<vmem>>, vector<16x128xf32>
    %c0_1 = arith.constant 0 : index
    %c0_2 = arith.constant 0 : index
    %1 = vector.load %arg2[%c0_1, %c0_2] : memref<128x128xf32, #tpu.memory_space<vmem>>, vector<128x128xf32>
    %cst = arith.constant dense<0.000000e+00> : vector<16x128xf32>
    %2 = tpu.matmul %0, %1, %cst {dimension_numbers = #tpu.dot_dimension_numbers<[1], [0], [0], [1], [0, 0, 1, 1], [], []>} : vector<16x128xf32>, vector<128x128xf32>, vector<16x128xf32> -> vector<16x128xf32>
    %c0_3 = arith.constant 0 : index
    %c0_4 = arith.constant 0 : index
    %3 = vector.load %arg4[%c0_3, %c0_4] : memref<1x128xf32, #tpu.memory_space<vmem>>, vector<1x128xf32>
    %4 = vector.broadcast %3 : vector<1x128xf32> to vector<16x128xf32>
    %5 = arith.addf %2, %4 : vector<16x128xf32>
    %cst_5 = arith.constant dense<0xFF800000> : vector<16xf32>
    %6 = vector.multi_reduction <maximumf>, %5, %cst_5 [1] : vector<16x128xf32> to vector<16xf32>
    %7 = vector.shape_cast %6 : vector<16xf32> to vector<16x1xf32>
    %8 = vector.broadcast %7 : vector<16x1xf32> to vector<16x128xf32>
    %9 = arith.subf %5, %8 : vector<16x128xf32>
    %10 = math.exp %9 : vector<16x128xf32>
    %cst_6 = arith.constant dense<0.000000e+00> : vector<16xf32>
    %11 = vector.multi_reduction <add>, %10, %cst_6 [1] : vector<16x128xf32> to vector<16xf32>
    %12 = vector.shape_cast %11 : vector<16xf32> to vector<16x1xf32>
    %13 = tpu.reciprocal %12 {approx = true} : vector<16x1xf32> -> vector<16x1xf32>
    %14 = arith.truncf %10 : vector<16x128xf32> to vector<16x128xbf16>
    %c0_7 = arith.constant 0 : index
    %c0_8 = arith.constant 0 : index
    %15 = vector.load %arg3[%c0_7, %c0_8] : memref<128x128xf32, #tpu.memory_space<vmem>>, vector<128x128xf32>
    %16 = arith.truncf %15 : vector<128x128xf32> to vector<128x128xbf16>
    %cst_9 = arith.constant dense<0.000000e+00> : vector<16x128xf32>
    %17 = tpu.matmul %14, %16, %cst_9 {dimension_numbers = #tpu.dot_dimension_numbers<[1], [0], [0], [1], [0, 0, 1, 1], [], []>} : vector<16x128xbf16>, vector<128x128xbf16>, vector<16x128xf32> -> vector<16x128xf32>
    %18 = vector.broadcast %13 : vector<16x1xf32> to vector<16x128xf32>
    %19 = arith.mulf %17, %18 : vector<16x128xf32>
    %c0_10 = arith.constant 0 : index
    %c0_11 = arith.constant 0 : index
    %20 = vector.load %arg5[%c0_10, %c0_11] : memref<16x128xf32, #tpu.memory_space<vmem>>, vector<16x128xf32>
    tpu.vector_store %arg5[%c0_10, %c0_11], %19 {strides = array<i32>} : memref<16x128xf32, #tpu.memory_space<vmem>>, vector<16x128xf32>,
    return
  }
  func.func @transform_0(%arg0: i32) -> (i32, i32) {
    %c0_i32 = arith.constant 0 : i32
    %c0_i32_0 = arith.constant 0 : i32
    return %arg0, %c0_i32 : i32, i32
  }
  func.func @transform_1(%arg0: i32) -> (i32, i32) {
    %c0_i32 = arith.constant 0 : i32
    %c0_i32_0 = arith.constant 0 : i32
    %c0_i32_1 = arith.constant 0 : i32
    return %c0_i32, %c0_i32_0 : i32, i32
  }
  func.func @transform_2(%arg0: i32) -> (i32, i32) {
    %c0_i32 = arith.constant 0 : i32
    %c0_i32_0 = arith.constant 0 : i32
    %c0_i32_1 = arith.constant 0 : i32
    return %c0_i32, %c0_i32_0 : i32, i32
  }
  func.func @transform_3(%arg0: i32) -> (i32, i32) {
    %c0_i32 = arith.constant 0 : i32
    %c0_i32_0 = arith.constant 0 : i32
    %c0_i32_1 = arith.constant 0 : i32
    return %c0_i32, %c0_i32_0 : i32, i32
  }
  func.func @transform_4(%arg0: i32) -> (i32, i32) {
    %c0_i32 = arith.constant 0 : i32
    %c0_i32_0 = arith.constant 0 : i32
    return %arg0, %c0_i32 : i32, i32
  }
}

</mosaic_0001>

<llo_original>
// kernel: tpu_custom_call.1
$region0: #{tpu_custom_call.1}
  #allocation0 [shape = 'u32[]', space=smem, size = 0x4, offset = 0x4, fixed_abs, tag = 'smem constant byte address 0x4 - core index']
  #allocation1 [shape = 'u32[144,128]{1,0:T(1,128)}', space=vmem, size = 0x12000, scoped, tag = 'internal scratch']
  %s0 = inlined_call_operand.hbm [shape: f32[16,128], index: 0, kind: input, shape index: {}]
  %s1 = inlined_call_operand.hbm [shape: f32[128,128], index: 1, kind: input, shape index: {}]
  %s2 = inlined_call_operand.hbm [shape: f32[128,128], index: 2, kind: input, shape index: {}]
  %s3 = inlined_call_operand.vmem [shape: f32[1,128], index: 3, kind: input, shape index: {}]
  %s4 = inlined_call_operand.hbm [shape: f32[16,128], index: 4, kind: output, shape index: {}]
  %s5 = sld [smem:[#allocation0]]
  $region38: #{tpu_custom_call.1} parent=0
    _
  %s7 = ssub.s32 1, %s5
  %s8 = scalar_select 0, %s7, %s5
  $region1: #{tpu_custom_call.1} parent=0
    #allocation2 [shape = 'u8[8192]{0}', space=vmem, size = 0x2000, scoped, tag = 'input window, operand 0, single buffered']
    #allocation3 [shape = 's32[1]{0}', space=sflag, size = 0x4, scoped, tag = 'scoped memory for tpu_custom_call.1']
    #allocation4 [shape = 's32[1]{0}', space=sflag, size = 0x4, scoped, tag = 'scoped memory for tpu_custom_call.1']
    #allocation5 [shape = 'u8[65536]{0}', space=vmem, size = 0x10000, scoped, tag = 'input window, operand 1, single buffered']
    #allocation6 [shape = 's32[1]{0}', space=sflag, size = 0x4, scoped, tag = 'scoped memory for tpu_custom_call.1']
    #allocation7 [shape = 'u8[65536]{0}', space=vmem, size = 0x10000, scoped, tag = 'input window, operand 2, single buffered']
    #allocation8 [shape = 'u8[8192]{0}', space=vmem, size = 0x2000, scoped, tag = 'output window, operand 0, single buffered']
    %9 = vsyncpa [#allocation3], 0
    %10 = vsyncpa [#allocation6], 0
    %11 = vsyncpa [#allocation4], 0
    // Predicated region
    $region2: #{tpu_custom_call.1} parent=1 // pred_check
      _
    $region3: #{tpu_custom_call.1} parent=1 // pred_check_branch
      %13 = sbr.rel (0) target = $region5
    $region4: #{tpu_custom_call.1} parent=1 // pred_region
      %s15 = ssub.s32 256, 256
      %16 = vsyncadd [#allocation3], %s15
      %s17 = sshll.u32 [#allocation2], 4
      %s18 = int_to_ptr.vmem [resolvable:$true] %s17
      %23 = dma.hbm_to_vmem [thread:$0]  %s0, 256, %s18, [#allocation3], 128, 128, 8
    $region5: #{tpu_custom_call.1} parent=1 // pred_fallthru
      _
    // Predicated region
    $region6: #{tpu_custom_call.1} parent=1 // pred_check
      _
    $region7: #{tpu_custom_call.1} parent=1 // pred_check_branch
      %25 = sbr.rel (0) target = $region9
    $region8: #{tpu_custom_call.1} parent=1 // pred_region
      %s27 = ssub.s32 2048, 2048
      %28 = vsyncadd [#allocation6], %s27
      %s29 = sshll.u32 [#allocation5], 4
      %s30 = int_to_ptr.vmem [resolvable:$true] %s29
      %35 = dma.hbm_to_vmem [thread:$0]  %s1, 2048, %s30, [#allocation6], 128, 128, 8
    $region9: #{tpu_custom_call.1} parent=1 // pred_fallthru
      _
    // Predicated region
    $region10: #{tpu_custom_call.1} parent=1 // pred_check
      _
    $region11: #{tpu_custom_call.1} parent=1 // pred_check_branch
      %37 = sbr.rel (0) target = $region13
    $region12: #{tpu_custom_call.1} parent=1 // pred_region
      %s39 = ssub.s32 2048, 2048
      %40 = vsyncadd [#allocation6], %s39
      %s41 = sshll.u32 [#allocation7], 4
      %s42 = int_to_ptr.vmem [resolvable:$true] %s41
      %47 = dma.hbm_to_vmem [thread:$0]  %s2, 2048, %s42, [#allocation6], 128, 128, 8
    $region13: #{tpu_custom_call.1} parent=1 // pred_fallthru
      _
    // Predicated region
    $region14: #{tpu_custom_call.1} parent=1 // pred_check
      _
    $region15: #{tpu_custom_call.1} parent=1 // pred_check_branch
      %49 = sbr.rel (0) target = $region17
    $region16: #{tpu_custom_call.1} parent=1 // pred_region
      _
    $region17: #{tpu_custom_call.1} parent=1 // pred_fallthru
      _
    // Predicated region
    $region18: #{tpu_custom_call.1} parent=1 // pred_check
      _
    $region19: #{tpu_custom_call.1} parent=1 // pred_check_branch
      %51 = sbr.rel (0) target = $region21
    $region20: #{tpu_custom_call.1} parent=1 // pred_region
      %52 = dma.done [#allocation3], 256
    $region21: #{tpu_custom_call.1} parent=1 // pred_fallthru
      _
    // Predicated region
    $region22: #{tpu_custom_call.1} parent=1 // pred_check
      _
    $region23: #{tpu_custom_call.1} parent=1 // pred_check_branch
      %54 = sbr.rel (0) target = $region25
    $region24: #{tpu_custom_call.1} parent=1 // pred_region
      %55 = dma.done [#allocation6], 2048
    $region25: #{tpu_custom_call.1} parent=1 // pred_fallthru
      _
    // Predicated region
    $region26: #{tpu_custom_call.1} parent=1 // pred_check
      _
    $region27: #{tpu_custom_call.1} parent=1 // pred_check_branch
      %57 = sbr.rel (0) target = $region29
    $region28: #{tpu_custom_call.1} parent=1 // pred_region
      %58 = dma.done [#allocation6], 2048
    $region29: #{tpu_custom_call.1} parent=1 // pred_fallthru
      _
    %v60 = vld [vmem:[#allocation2] sm:$0xff]
    %v61 = vld [vmem:[#allocation2 + $0x8] sm:$0xff]
    %v62 = vld [vmem:[#allocation5] sm:$0xff]
    %v63 = vld [vmem:[#allocation5 + $0x8] sm:$0xff]
    %v64 = vld [vmem:[#allocation5 + $0x10] sm:$0xff]
    %v65 = vld [vmem:[#allocation5 + $0x18] sm:$0xff]
    %v66 = vld [vmem:[#allocation5 + $0x20] sm:$0xff]
    %v67 = vld [vmem:[#allocation5 + $0x28] sm:$0xff]
    %v68 = vld [vmem:[#allocation5 + $0x30] sm:$0xff]
    %v69 = vld [vmem:[#allocation5 + $0x38] sm:$0xff]
    %v70 = vld [vmem:[#allocation5 + $0x40] sm:$0xff]
    %v71 = vld [vmem:[#allocation5 + $0x48] sm:$0xff]
    %v72 = vld [vmem:[#allocation5 + $0x50] sm:$0xff]
    %v73 = vld [vmem:[#allocation5 + $0x58] sm:$0xff]
    %v74 = vld [vmem:[#allocation5 + $0x60] sm:$0xff]
    %v75 = vld [vmem:[#allocation5 + $0x68] sm:$0xff]
    %v76 = vld [vmem:[#allocation5 + $0x70] sm:$0xff]
    %v77 = vld [vmem:[#allocation5 + $0x78] sm:$0xff]
    %v78 = vld [vmem:[%s3] sm:$0x1]
    %v80 = vlaneseq
    %v81 = vshrl.u32 %v80, 7
    %v82 = vsub.s32 0, %v81
    %v83 = vrot.slane %v78, %v82
    %85 = vmatprep.subr.mxu0 0.0
    %86 = vmatpush1.msra.mxu0 %v77
    %87 = vmatprep.subr.mxu0 0.0
    %88 = vmatpush1.msra.mxu0 %v76
    %89 = vmatprep.subr.mxu0 0.0
    %90 = vmatpush1.msra.mxu0 %v75
    %91 = vmatprep.subr.mxu0 0.0
    %92 = vmatpush1.msra.mxu0 %v74
    %93 = vmatprep.subr.mxu0 0.0
    %94 = vmatpush1.msra.mxu0 %v73
    %95 = vmatprep.subr.mxu0 0.0
    %96 = vmatpush1.msra.mxu0 %v72
    %97 = vmatprep.subr.mxu0 0.0
    %98 = vmatpush1.msra.mxu0 %v71
    %99 = vmatprep.subr.mxu0 0.0
    %100 = vmatpush1.msra.mxu0 %v70
    %101 = vmatprep.subr.mxu0 0.0
    %102 = vmatpush1.msra.mxu0 %v69
    %103 = vmatprep.subr.mxu0 0.0
    %104 = vmatpush1.msra.mxu0 %v68
    %105 = vmatprep.subr.mxu0 0.0
    %106 = vmatpush1.msra.mxu0 %v67
    %107 = vmatprep.subr.mxu0 0.0
    %108 = vmatpush1.msra.mxu0 %v66
    %109 = vmatprep.subr.mxu0 0.0
    %110 = vmatpush1.msra.mxu0 %v65
    %111 = vmatprep.subr.mxu0 0.0
    %112 = vmatpush1.msra.mxu0 %v64
    %113 = vmatprep.subr.mxu0 0.0
    %114 = vmatpush1.msra.mxu0 %v63
    %115 = vmatprep.subr.mxu0 0.0
    %116 = vmatpush1.msra.mxu0 %v62
    %117 = vmatprep.subr.mxu0 0.0
    %118 = vmatpush2.msra.mxu0 0.0
    %119 = vmatprep.subr.mxu0 0.0
    %120 = vmatpush2.msra.mxu0 0.0
    %121 = vmatprep.subr.mxu0 0.0
    %122 = vmatpush2.msra.mxu0 0.0
    %123 = vmatprep.subr.mxu0 0.0
    %124 = vmatpush2.msra.mxu0 0.0
    %125 = vmatprep.subr.mxu0 0.0
    %126 = vmatpush2.msra.mxu0 0.0
    %127 = vmatprep.subr.mxu0 0.0
    %128 = vmatpush2.msra.mxu0 0.0
    %129 = vmatprep.subr.mxu0 0.0
    %130 = vmatpush2.msra.mxu0 0.0
    %131 = vmatprep.subr.mxu0 0.0
    %132 = vmatpush2.msra.mxu0 0.0
    %133 = vmatprep.subr.mxu0 0.0
    %134 = vmatpush2.msra.mxu0 0.0
    %135 = vmatprep.subr.mxu0 0.0
    %136 = vmatpush2.msra.mxu0 0.0
    %137 = vmatprep.subr.mxu0 0.0
    %138 = vmatpush2.msra.mxu0 0.0
    %139 = vmatprep.subr.mxu0 0.0
    %140 = vmatpush2.msra.mxu0 0.0
    %141 = vmatprep.subr.mxu0 0.0
    %142 = vmatpush2.msra.mxu0 0.0
    %143 = vmatprep.subr.mxu0 0.0
    %144 = vmatpush2.msra.mxu0 0.0
    %145 = vmatprep.subr.mxu0 0.0
    %146 = vmatpush2.msra.mxu0 0.0
    %147 = vmatprep.subr.mxu0 0.0
    %148 = vmatpush2.msra.mxu0 0.0
    %149 = vmatprep.mubr.f32.mxu0 0.0
    %150 = vmatmul.mubr.f32.gmra.mxu0 %v60
    %v151 = vpop.f32.mrf.mxu0
    %v152 = vadd.f32 %v83, %v151
    %v153 = vpop.f32.mrf.mxu0
    %154 = vmatprep.mubr.f32.mxu0 0.0
    %155 = vmatmul.mubr.f32.gmra.mxu0 %v61
    %v156 = vpop.f32.mrf.mxu0
    %v157 = vadd.f32 %v83, %v156
    %v158 = vpop.f32.mrf.mxu0
    %159 = vdwg.mxu0
    %160 = vmax.xlane.f32.xlu0 %v152
    %v161 = vpop.xlane.xlu0 %160
    %162 = vmax.xlane.f32.xlu0 %v157
    %v163 = vpop.xlane.xlu0 %162
    %v164 = vsub.f32 %v152, %v161
    %v165 = vsub.f32 %v157, %v163
    %v166 = vmul.f32 %v164, 1.442695
    %v167 = vpow.pop %v166
    %v168 = vmul.f32 %v165, 1.442695
    %v169 = vpow.pop %v168
    %170 = vadd.xlane.f32.xlu0 %v167
    %v171 = vpop.xlane.xlu0 %170
    %172 = vadd.xlane.f32.xlu0 %v169
    %v173 = vpop.xlane.xlu0 %172
    %v174 = vrcp.pop %v171
    %v175 = vrcp.pop %v173
    %v176 = vpack.c.bf16 %v169, %v167
    %v177 = vld [vmem:[#allocation7] sm:$0xff]
    %v178 = vld [vmem:[#allocation7 + $0x8] sm:$0xff]
    %v179 = vld [vmem:[#allocation7 + $0x10] sm:$0xff]
    %v180 = vld [vmem:[#allocation7 + $0x18] sm:$0xff]
    %v181 = vld [vmem:[#allocation7 + $0x20] sm:$0xff]
    %v182 = vld [vmem:[#allocation7 + $0x28] sm:$0xff]
    %v183 = vld [vmem:[#allocation7 + $0x30] sm:$0xff]
    %v184 = vld [vmem:[#allocation7 + $0x38] sm:$0xff]
    %v185 = vld [vmem:[#allocation7 + $0x40] sm:$0xff]
    %v186 = vld [vmem:[#allocation7 + $0x48] sm:$0xff]
    %v187 = vld [vmem:[#allocation7 + $0x50] sm:$0xff]
    %v188 = vld [vmem:[#allocation7 + $0x58] sm:$0xff]
    %v189 = vld [vmem:[#allocation7 + $0x60] sm:$0xff]
    %v190 = vld [vmem:[#allocation7 + $0x68] sm:$0xff]
    %v191 = vld [vmem:[#allocation7 + $0x70] sm:$0xff]
    %v192 = vld [vmem:[#allocation7 + $0x78] sm:$0xff]
    %v193 = vpack.c.bf16 %v178, %v177
    %v194 = vpack.c.bf16 %v180, %v179
    %v195 = vpack.c.bf16 %v182, %v181
    %v196 = vpack.c.bf16 %v184, %v183
    %v197 = vpack.c.bf16 %v186, %v185
    %v198 = vpack.c.bf16 %v188, %v187
    %v199 = vpack.c.bf16 %v190, %v189
    %v200 = vpack.c.bf16 %v192, %v191
    %201 = vmatprep.subr.bf16.mxu0 0
    %202 = vmatpush1.bf16.msra.mxu0 %v200
    %203 = vmatprep.subr.bf16.mxu0 0
    %204 = vmatpush1.bf16.msra.mxu0 %v199
    %205 = vmatprep.subr.bf16.mxu0 0
    %206 = vmatpush1.bf16.msra.mxu0 %v198
    %207 = vmatprep.subr.bf16.mxu0 0
    %208 = vmatpush1.bf16.msra.mxu0 %v197
    %209 = vmatprep.subr.bf16.mxu0 0
    %210 = vmatpush1.bf16.msra.mxu0 %v196
    %211 = vmatprep.subr.bf16.mxu0 0
    %212 = vmatpush1.bf16.msra.mxu0 %v195
    %213 = vmatprep.subr.bf16.mxu0 0
    %214 = vmatpush1.bf16.msra.mxu0 %v194
    %215 = vmatprep.subr.bf16.mxu0 0
    %216 = vmatpush1.bf16.msra.mxu0 %v193
    %217 = vmatprep.subr.bf16.mxu0 0
    %218 = vmatpush2.bf16.msra.mxu0 0
    %219 = vmatprep.subr.bf16.mxu0 0
    %220 = vmatpush2.bf16.msra.mxu0 0
    %221 = vmatprep.subr.bf16.mxu0 0
    %222 = vmatpush2.bf16.msra.mxu0 0
    %223 = vmatprep.subr.bf16.mxu0 0
    %224 = vmatpush2.bf16.msra.mxu0 0
    %225 = vmatprep.subr.bf16.mxu0 0
    %226 = vmatpush2.bf16.msra.mxu0 0
    %227 = vmatprep.subr.bf16.mxu0 0
    %228 = vmatpush2.bf16.msra.mxu0 0
    %229 = vmatprep.subr.bf16.mxu0 0
    %230 = vmatpush2.bf16.msra.mxu0 0
    %231 = vmatprep.subr.bf16.mxu0 0
    %232 = vmatpush2.bf16.msra.mxu0 0
    %233 = vmatprep.mubr.bf16.mxu0 0
    %234 = vmatmul.mubr.bf16.gmra.mxu0 %v176
    %v235 = vpop.f32.mrf.mxu0
    %v236 = vadd.f32 0.0, %v235
    %v237 = vpop.f32.mrf.mxu0
    %v238 = vpop.f32.mrf.mxu0
    %v239 = vadd.f32 0.0, %v238
    %v240 = vpop.f32.mrf.mxu0
    %241 = vdwg.mxu0
    %v242 = vmul.f32 %v236, %v174
    %v243 = vmul.f32 %v239, %v175
    %244 = vst [vmem:[#allocation8] sm:$0xff] %v242
    %245 = vst [vmem:[#allocation8 + $0x8] sm:$0xff] %v243
    // Predicated region
    $region30: #{tpu_custom_call.1} parent=1 // pred_check
      _
    $region31: #{tpu_custom_call.1} parent=1 // pred_check_branch
      %247 = sbr.rel (0) target = $region33
    $region32: #{tpu_custom_call.1} parent=1 // pred_region
      %s249 = ssub.s32 256, 256
      %250 = vsyncadd [#allocation4], %s249
      %s251 = sshll.u32 [#allocation8], 4
      %s252 = int_to_ptr.vmem [resolvable:$true] %s251
      %257 = dma.vmem_to_hbm [thread:$0]  %s252, 256, %s4, [#allocation4], 128, 128, 8
    $region33: #{tpu_custom_call.1} parent=1 // pred_fallthru
      _
    // Predicated region
    $region34: #{tpu_custom_call.1} parent=1 // pred_check
      _
    $region35: #{tpu_custom_call.1} parent=1 // pred_check_branch
      %259 = sbr.rel (0) target = $region37
    $region36: #{tpu_custom_call.1} parent=1 // pred_region
      %260 = dma.done [#allocation4], 256
    $region37: #{tpu_custom_call.1} parent=1 // pred_fallthru
      _
    %261 = vsyncpa [#allocation3], 1
    %262 = vsyncpa [#allocation6], 1
    %263 = vsyncpa [#allocation4], 1

</llo_original>
